<compile_context>
chip_gen: v6e
topology: v6e:2x2x1
jax: 0.10.0
libtpu: 0.0.40
codegen_flags: <defaults>
</compile_context>

<pallas_src>
import functools

import jax
import jax.numpy as jnp
from jax.experimental import pallas as pl
from jax.experimental.pallas import tpu as pltpu


def _round_up(x: int, m: int) -> int:
    return ((x + m - 1) // m) * m


def _focal_loss_kernel(alpha_ref, logits_ref, targets_ref, out_ref, *, gamma: float):
    x = logits_ref[...]                                   # (C, TN) f32, classes on sublanes
    t_b = jnp.broadcast_to(targets_ref[...], x.shape)     # (C, TN) i32 (sublane broadcast)
    a_b = jnp.broadcast_to(alpha_ref[...], x.shape)       # (C, TN) f32 (lane broadcast)

    # numerically stable log-sum-exp over the class (sublane) axis
    m = jnp.max(x, axis=0, keepdims=True)                                # (1, TN)
    lse = m + jnp.log(jnp.sum(jnp.exp(x - m), axis=0, keepdims=True))    # (1, TN)

    # masked select of the target logit / per-class weight (no f32 one-hot passes).
    # Padded columns carry target == -1 -> no hit -> alpha_t = 0 -> focal = 0.
    cls = jax.lax.broadcasted_iota(jnp.int32, x.shape, 0)                # (C, TN)
    hit = cls == t_b                                                     # (C, TN) bool
    tgt_logit = jnp.sum(jnp.where(hit, x, 0.0), axis=0, keepdims=True)   # (1, TN)
    alpha_t = jnp.sum(jnp.where(hit, a_b, 0.0), axis=0, keepdims=True)   # (1, TN)

    ce = alpha_t * (lse - tgt_logit)                                     # (1, TN)
    pt = jnp.exp(-ce)
    om = 1.0 - pt

    g = float(gamma)
    if g.is_integer() and 0.0 <= g <= 8.0:
        gi = int(g)
        if gi == 0:
            mod = jnp.ones_like(om)
        else:
            mod = om
            for _ in range(gi - 1):                       # integer gamma: VPU multiplies,
                mod = mod * om                            # avoids exp(g*log(0)) when pt == 1
    else:
        # general (non-integer) gamma: guard pow against om == 0 (pt == 1)
        mod = jnp.where(
            om > 0.0,
            jnp.power(jnp.maximum(om, jnp.float32(1e-30)), jnp.float32(g)),
            jnp.float32(0.0),
        )

    out_ref[...] = mod * ce


def focal_loss(logits: jax.Array, targets: jax.Array, alpha: jax.Array | None = None,
               gamma: float = 2.0, reduction: str = "mean",
               tile_n: int | None = None) -> jax.Array:
    """Focal loss. logits: (N, C) f32, targets: (N,) int, alpha: (C,) f32 or None."""
    n, c = logits.shape
    if alpha is None:
        alpha = jnp.ones((c,), jnp.float32)

    if tile_n is None:
        # Keep the double-buffered logits tile (2 * C * tile_n * 4 B) ~<= 8 MiB so it
        # fits the default scoped VMEM on v5e/v6e/v7x.  For very large C either the
        # standard (N, C)-on-lanes layout with class tiling or a raised
        # vmem_limit_bytes would be preferable.
        budget_cols = (4 * 1024 * 1024) // max(c * 4, 1)
        tile_n = max(128, min(2048, (budget_cols // 128) * 128))
    tile_n = min(tile_n, _round_up(n, 128))
    tile_n = max(128, _round_up(tile_n, 128))      # lane-aligned tile

    n_pad = _round_up(n, tile_n)

    # Layout plumbing: rows -> lanes, classes -> sublanes (lane-dense for small C).
    logits_t = jnp.transpose(logits.astype(jnp.float32))          # (C, N)
    targets_i = targets.astype(jnp.int32)
    if n_pad != n:
        logits_t = jnp.pad(logits_t, ((0, 0), (0, n_pad - n)))
        # -1 marks padded rows; they contribute exactly 0 to the loss.
        targets_i = jnp.pad(targets_i, (0, n_pad - n), constant_values=-1)
    targets_row = targets_i.reshape(1, n_pad)
    alpha_col = alpha.astype(jnp.float32).reshape(c, 1)

    # TODO(synk): torch.cross_entropy raises on out-of-range class indices; here such
    # rows (like the -1 padding) silently contribute 0 instead.

    kernel = functools.partial(_focal_loss_kernel, gamma=gamma)
    grid = (n_pad // tile_n,)

    focal_row = pl.pallas_call(
        kernel,
        out_shape=jax.ShapeDtypeStruct((1, n_pad), jnp.float32),
        grid_spec=pltpu.PrefetchScalarGridSpec(
            num_scalar_prefetch=0,
            grid=grid,
            in_specs=[
                pl.BlockSpec((c, 1), lambda i: (0, 0)),        # alpha (resident across grid)
                pl.BlockSpec((c, tile_n), lambda i: (0, i)),   # logits tile, rows on lanes
                pl.BlockSpec((1, tile_n), lambda i: (0, i)),   # targets, lane-dense row
            ],
            out_specs=pl.BlockSpec((1, tile_n), lambda i: (0, i)),  # lane-dense per-row focal
        ),
        compiler_params=pltpu.CompilerParams(
            # independent tiles -> both v7x TensorCores can work the grid
            dimension_semantics=("parallel",),
        ),
    )(alpha_col, logits_t, targets_row)

    focal = focal_row[0, :n]
    if reduction == "mean":
        return focal.mean()
    if reduction == "sum":
        return focal.sum()
    return focal


def _focal_loss_ref(logits, targets, alpha, gamma=2.0, reduction="mean"):
    """Pure-JAX reference matching torch.nn.functional.cross_entropy semantics."""
    logz = jax.nn.logsumexp(logits, axis=-1)
    tgt_logit = jnp.take_along_axis(logits, targets[:, None], axis=-1)[:, 0]
    ce = alpha[targets] * (logz - tgt_logit)
    pt = jnp.exp(-ce)
    focal = (1.0 - pt) ** gamma * ce
    if reduction == "mean":
        return focal.mean()
    if reduction == "sum":
        return focal.sum()
    return focal


if __name__ == "__main__":
    key = jax.random.PRNGKey(0)
    N, C = 256, 8          # small synthetic shapes: 256 samples, 8 classes
    GAMMA = 2.0

    k_logits, k_targets = jax.random.split(key)
    logits = jax.random.normal(k_logits, (N, C), dtype=jnp.float32) * 2.0
    targets = jax.random.randint(k_targets, (N,), 0, C, dtype=jnp.int32)
    # deterministic per-class weighting factor (alpha), as the module's __init__ allows
    alpha = 0.5 + jnp.arange(C, dtype=jnp.float32) / C

    # mean reduction (module default)
    loss = jax.block_until_ready(focal_loss(logits, targets, alpha, gamma=GAMMA))
    ref = _focal_loss_ref(logits, targets, alpha, gamma=GAMMA)
    assert jnp.allclose(loss, ref, rtol=1e-5, atol=1e-5), (loss, ref)

    # padding path (N not a multiple of 128) + 'sum' reduction
    n2 = 200
    loss_sum = jax.block_until_ready(
        focal_loss(logits[:n2], targets[:n2], alpha, gamma=GAMMA, reduction="sum"))
    ref_sum = _focal_loss_ref(logits[:n2], targets[:n2], alpha, gamma=GAMMA, reduction="sum")
    assert jnp.allclose(loss_sum, ref_sum, rtol=1e-5, atol=1e-4), (loss_sum, ref_sum)

    print("KERNEL_OK")
</pallas_src>

<mosaic_0001>
module attributes {stable_mosaic.version = 11 : i64} {
  func.func @_focal_loss_kernel(%arg0: i32, %arg1: memref<8x1xf32, #tpu.memory_space<vmem>>, %arg2: memref<8x256xf32, #tpu.memory_space<vmem>>, %arg3: memref<1x256xi32, #tpu.memory_space<vmem>>, %arg4: memref<1x256xf32, #tpu.memory_space<vmem>>) attributes {dimension_semantics = [#tpu.dimension_semantics<parallel>], iteration_bounds = array<i64: 1>, scalar_prefetch = 0 : i64, scratch_operands = 0 : i64, tpu.core_type = #tpu.core_type<tc>, window_params = [{pipeline_mode = #tpu.pipeline_mode<synchronous>, transform_indices = @transform_0, window_bounds = array<i64: 8, 1>}, {transform_indices = @transform_1, window_bounds = array<i64: 8, 256>}, {transform_indices = @transform_2, window_bounds = array<i64: 1, 256>}, {transform_indices = @transform_3, window_bounds = array<i64: 1, 256>}]} {
    %c0 = arith.constant 0 : index
    %c0_0 = arith.constant 0 : index
    %0 = vector.load %arg2[%c0, %c0_0] : memref<8x256xf32, #tpu.memory_space<vmem>>, vector<8x256xf32>
    %c0_1 = arith.constant 0 : index
    %c0_2 = arith.constant 0 : index
    %1 = vector.load %arg3[%c0_1, %c0_2] : memref<1x256xi32, #tpu.memory_space<vmem>>, vector<1x256xi32>
    %2 = vector.shape_cast %1 : vector<1x256xi32> to vector<1x256xi32>
    %3 = vector.broadcast %2 : vector<1x256xi32> to vector<8x256xi32>
    %c0_3 = arith.constant 0 : index
    %c0_4 = arith.constant 0 : index
    %4 = vector.load %arg1[%c0_3, %c0_4] : memref<8x1xf32, #tpu.memory_space<vmem>>, vector<8x1xf32>
    %5 = vector.shape_cast %4 : vector<8x1xf32> to vector<8x1xf32>
    %6 = vector.broadcast %5 : vector<8x1xf32> to vector<8x256xf32>
    %cst = arith.constant dense<0xFF800000> : vector<256xf32>
    %7 = vector.multi_reduction <maximumf>, %0, %cst [0] : vector<8x256xf32> to vector<256xf32>
    %8 = vector.shape_cast %7 : vector<256xf32> to vector<1x256xf32>
    %9 = vector.broadcast %8 : vector<1x256xf32> to vector<8x256xf32>
    %10 = arith.subf %0, %9 : vector<8x256xf32>
    %11 = math.exp %10 : vector<8x256xf32>
    %cst_5 = arith.constant dense<0.000000e+00> : vector<256xf32>
    %12 = vector.multi_reduction <add>, %11, %cst_5 [0] : vector<8x256xf32> to vector<256xf32>
    %13 = vector.shape_cast %12 : vector<256xf32> to vector<1x256xf32>
    %14 = math.log %13 : vector<1x256xf32>
    %15 = arith.addf %8, %14 : vector<1x256xf32>
    %16 = tpu.iota {dimensions = array<i32: 0>} : vector<8x256xi32>
    %17 = arith.cmpi eq, %16, %3 : vector<8x256xi32>
    %cst_6 = arith.constant 0.000000e+00 : f32
    %18 = vector.broadcast %cst_6 : f32 to vector<8x256xf32>
    %19 = arith.select %17, %0, %18 : vector<8x256xi1>, vector<8x256xf32>
    %cst_7 = arith.constant dense<0.000000e+00> : vector<256xf32>
    %20 = vector.multi_reduction <add>, %19, %cst_7 [0] : vector<8x256xf32> to vector<256xf32>
    %21 = vector.shape_cast %20 : vector<256xf32> to vector<1x256xf32>
    %cst_8 = arith.constant 0.000000e+00 : f32
    %22 = vector.broadcast %cst_8 : f32 to vector<8x256xf32>
    %23 = arith.select %17, %6, %22 : vector<8x256xi1>, vector<8x256xf32>
    %cst_9 = arith.constant dense<0.000000e+00> : vector<256xf32>
    %24 = vector.multi_reduction <add>, %23, %cst_9 [0] : vector<8x256xf32> to vector<256xf32>
    %25 = vector.shape_cast %24 : vector<256xf32> to vector<1x256xf32>
    %26 = arith.subf %15, %21 : vector<1x256xf32>
    %27 = arith.mulf %25, %26 : vector<1x256xf32>
    %cst_10 = arith.constant 0.000000e+00 : f32
    %28 = vector.broadcast %cst_10 : f32 to vector<1x256xf32>
    %29 = arith.subf %28, %27 : vector<1x256xf32>
    %30 = math.exp %29 : vector<1x256xf32>
    %cst_11 = arith.constant 1.000000e+00 : f32
    %31 = vector.broadcast %cst_11 : f32 to vector<1x256xf32>
    %32 = arith.subf %31, %30 : vector<1x256xf32>
    %33 = arith.mulf %32, %32 : vector<1x256xf32>
    %34 = arith.mulf %33, %27 : vector<1x256xf32>
    %c0_12 = arith.constant 0 : index
    %c0_13 = arith.constant 0 : index
    %35 = vector.load %arg4[%c0_12, %c0_13] : memref<1x256xf32, #tpu.memory_space<vmem>>, vector<1x256xf32>
    tpu.vector_store %arg4[%c0_12, %c0_13], %34 {strides = array<i32>} : memref<1x256xf32, #tpu.memory_space<vmem>>, vector<1x256xf32>,
    return
  }
  func.func @transform_0(%arg0: i32) -> (i32, i32) {
    %c0_i32 = arith.constant 0 : i32
    %c0_i32_0 = arith.constant 0 : i32
    %c0_i32_1 = arith.constant 0 : i32
    return %c0_i32, %c0_i32_0 : i32, i32
  }
  func.func @transform_1(%arg0: i32) -> (i32, i32) {
    %c0_i32 = arith.constant 0 : i32
    %c0_i32_0 = arith.constant 0 : i32
    return %c0_i32, %arg0 : i32, i32
  }
  func.func @transform_2(%arg0: i32) -> (i32, i32) {
    %c0_i32 = arith.constant 0 : i32
    %c0_i32_0 = arith.constant 0 : i32
    return %c0_i32, %arg0 : i32, i32
  }
  func.func @transform_3(%arg0: i32) -> (i32, i32) {
    %c0_i32 = arith.constant 0 : i32
    %c0_i32_0 = arith.constant 0 : i32
    return %c0_i32, %arg0 : i32, i32
  }
}

</mosaic_0001>

<llo_original>
// kernel: tpu_custom_call.1
$region0: #{tpu_custom_call.1}
  #allocation0 [shape = 'u32[]', space=smem, size = 0x4, offset = 0x4, fixed_abs, tag = 'smem constant byte address 0x4 - core index']
  #allocation1 [shape = 'u32[144,128]{1,0:T(1,128)}', space=vmem, size = 0x12000, scoped, tag = 'internal scratch']
  %s0 = inlined_call_operand.vmem [shape: f32[8,1], index: 0, kind: input, shape index: {}]
  %s1 = inlined_call_operand.hbm [shape: f32[8,256], index: 1, kind: input, shape index: {}]
  %s2 = inlined_call_operand.vmem [shape: s32[1,256], index: 2, kind: input, shape index: {}]
  %s3 = inlined_call_operand.hbm [shape: f32[1,256], index: 3, kind: output, shape index: {}]
  %s4 = sld [smem:[#allocation0]]
  $region26: #{tpu_custom_call.1} parent=0
    _
  %s6 = ssub.s32 1, %s4
  %s7 = scalar_select 0, %s6, %s4
  $region1: #{tpu_custom_call.1} parent=0
    #allocation2 [shape = 'u8[8192]{0}', space=vmem, size = 0x2000, scoped, tag = 'input window, operand 1, single buffered']
    #allocation3 [shape = 's32[1]{0}', space=sflag, size = 0x4, scoped, tag = 'scoped memory for tpu_custom_call.1']
    #allocation4 [shape = 's32[1]{0}', space=sflag, size = 0x4, scoped, tag = 'scoped memory for tpu_custom_call.1']
    #allocation5 [shape = 'u8[1024]{0}', space=vmem, size = 0x400, scoped, tag = 'output window, operand 0, single buffered']
    %8 = vsyncpa [#allocation3], 0
    %9 = vsyncpa [#allocation4], 0
    // Predicated region
    $region2: #{tpu_custom_call.1} parent=1 // pred_check
      _
    $region3: #{tpu_custom_call.1} parent=1 // pred_check_branch
      %11 = sbr.rel (0) target = $region5
    $region4: #{tpu_custom_call.1} parent=1 // pred_region
      _
    $region5: #{tpu_custom_call.1} parent=1 // pred_fallthru
      _
    // Predicated region
    $region6: #{tpu_custom_call.1} parent=1 // pred_check
      _
    $region7: #{tpu_custom_call.1} parent=1 // pred_check_branch
      %13 = sbr.rel (0) target = $region9
    $region8: #{tpu_custom_call.1} parent=1 // pred_region
      %s15 = ssub.s32 256, 256
      %16 = vsyncadd [#allocation3], %s15
      %s18 = sshll.u32 [#allocation2], 4
      %s19 = int_to_ptr.vmem [resolvable:$true] %s18
      %21 = dma.hbm_to_vmem [thread:$0]  %s1, 256, %s19, [#allocation3]
    $region9: #{tpu_custom_call.1} parent=1 // pred_fallthru
      _
    // Predicated region
    $region10: #{tpu_custom_call.1} parent=1 // pred_check
      _
    $region11: #{tpu_custom_call.1} parent=1 // pred_check_branch
      %23 = sbr.rel (0) target = $region13
    $region12: #{tpu_custom_call.1} parent=1 // pred_region
      _
    $region13: #{tpu_custom_call.1} parent=1 // pred_fallthru
      _
    // Predicated region
    $region14: #{tpu_custom_call.1} parent=1 // pred_check
      _
    $region15: #{tpu_custom_call.1} parent=1 // pred_check_branch
      %25 = sbr.rel (0) target = $region17
    $region16: #{tpu_custom_call.1} parent=1 // pred_region
      %26 = dma.done [#allocation3], 256
    $region17: #{tpu_custom_call.1} parent=1 // pred_fallthru
      _
    %v27 = vld [vmem:[#allocation2] sm:$0xff]
    %v28 = vld [vmem:[#allocation2 + $0x8] sm:$0xff]
    %v29 = vld [vmem:[%s2] sm:$0x3]
    %v30 = vlaneseq
    %v31 = vshrl.u32 %v30, 7
    %v32 = vsub.s32 0, %v31
    %v33 = vrot.slane %v29, %v32
    %v34 = vlaneseq
    %v35 = vshrl.u32 %v34, 7
    %v36 = vsub.s32 1, %v35
    %v37 = vrot.slane %v29, %v36
    %v38 = vld [vmem:[%s0] sm:$0xff]
    %40 = vset.pattern.permute.xlu0 0
    %41 = vperm.xlu0 %40, %v38
    %v42 = vpop.permute.xlu0 %41
    %v44 = vrot.slane %v27, 4
    %v45 = vmax.f32 %v27, %v44
    %v46 = vrot.slane %v45, 2
    %v47 = vmax.f32 %v45, %v46
    %v48 = vrot.slane %v47, 1
    %v49 = vmax.f32 %v47, %v48
    %v50 = vrot.slane %v28, 4
    %v51 = vmax.f32 %v28, %v50
    %v52 = vrot.slane %v51, 2
    %v53 = vmax.f32 %v51, %v52
    %v54 = vrot.slane %v53, 1
    %v55 = vmax.f32 %v53, %v54
    %v56 = vsub.f32 %v27, %v49
    %v57 = vsub.f32 %v28, %v55
    %v58 = vmul.f32 %v56, 1.442695
    %v59 = vpow.pop %v58
    %v60 = vmul.f32 %v57, 1.442695
    %v61 = vpow.pop %v60
    %v62 = vrot.slane %v59, 4
    %v63 = vadd.f32 %v59, %v62
    %v64 = vrot.slane %v63, 2
    %v65 = vadd.f32 %v63, %v64
    %v66 = vrot.slane %v65, 1
    %v67 = vadd.f32 %v65, %v66
    %v68 = vrot.slane %v61, 4
    %v69 = vadd.f32 %v61, %v68
    %v70 = vrot.slane %v69, 2
    %v71 = vadd.f32 %v69, %v70
    %v72 = vrot.slane %v71, 1
    %v73 = vadd.f32 %v71, %v72
    %v74 = vlog2.pop %v67
    %v75 = vmul.f32 %v74, 0.6931472
    %v76 = vlog2.pop %v73
    %v77 = vmul.f32 %v76, 0.6931472
    %v78 = vadd.f32 %v49, %v75
    %v79 = vadd.f32 %v55, %v77
    %v80 = vlaneseq
    %v81 = vshrl.u32 %v80, 7
    %vm82 = vcmp.eq.s32.totalorder %v81, %v33
    %vm83 = vcmp.eq.s32.totalorder %v81, %v37
    %v84 = vsel %vm82, %v27, 0.0
    %v85 = vsel %vm83, %v28, 0.0
    %v86 = vrot.slane %v84, 4
    %v87 = vadd.f32 %v84, %v86
    %v88 = vrot.slane %v87, 2
    %v89 = vadd.f32 %v87, %v88
    %v90 = vrot.slane %v89, 1
    %v91 = vadd.f32 %v89, %v90
    %v92 = vrot.slane %v85, 4
    %v93 = vadd.f32 %v85, %v92
    %v94 = vrot.slane %v93, 2
    %v95 = vadd.f32 %v93, %v94
    %v96 = vrot.slane %v95, 1
    %v97 = vadd.f32 %v95, %v96
    %v98 = vsel %vm82, %v42, 0.0
    %v99 = vsel %vm83, %v42, 0.0
    %v100 = vrot.slane %v98, 4
    %v101 = vadd.f32 %v98, %v100
    %v102 = vrot.slane %v101, 2
    %v103 = vadd.f32 %v101, %v102
    %v104 = vrot.slane %v103, 1
    %v105 = vadd.f32 %v103, %v104
    %v106 = vrot.slane %v99, 4
    %v107 = vadd.f32 %v99, %v106
    %v108 = vrot.slane %v107, 2
    %v109 = vadd.f32 %v107, %v108
    %v110 = vrot.slane %v109, 1
    %v111 = vadd.f32 %v109, %v110
    %v112 = vsub.f32 %v78, %v91
    %v113 = vsub.f32 %v79, %v97
    %v114 = vmul.f32 %v105, %v112
    %v115 = vmul.f32 %v111, %v113
    %v116 = vsub.f32 0.0, %v114
    %v117 = vsub.f32 0.0, %v115
    %v118 = vmul.f32 %v116, 1.442695
    %v119 = vpow.pop %v118
    %v120 = vmul.f32 %v117, 1.442695
    %v121 = vpow.pop %v120
    %v122 = vsub.f32 1.0, %v119
    %v123 = vsub.f32 1.0, %v121
    %v124 = vmul.f32 %v122, %v122
    %v125 = vmul.f32 %v123, %v123
    %v126 = vmul.f32 %v124, %v114
    %v127 = vmul.f32 %v125, %v115
    %v130 = vcombine.low %v126, %v127
    %v132 = vunpack.c.l.s4 1966171168
    %v133 = vunpack.c.0.s8 %v132
    %v134 = vlaneseq
    %v135 = vshrl.u32 %v134, 7
    %v136 = vsub.s32 %v133, %v135
    %v137 = vrot.slane %v130, %v136
    %v139 = vunpack.c.l.s4 1966171168
    %v140 = vunpack.c.0.s8 %v139
    %v141 = vlaneseq
    %v142 = vshrl.u32 %v141, 7
    %v143 = vsub.s32 %v140, %v142
    %v144 = vrot.slane %v137, %v143
    %v146 = vlaneseq
    %vm147 = vcmp.ge.s32.totalorder %v146, 0
    %vm148 = vcmp.lt.s32.totalorder %v146, 256
    %vm149 = vmand %vm147, %vm148
    %150 = vst.msk [vmem:[#allocation5] sm:$0x3] %vm149, %v144
    // Predicated region
    $region18: #{tpu_custom_call.1} parent=1 // pred_check
      _
    $region19: #{tpu_custom_call.1} parent=1 // pred_check_branch
      %152 = sbr.rel (0) target = $region21
    $region20: #{tpu_custom_call.1} parent=1 // pred_region
      %s154 = ssub.s32 32, 32
      %155 = vsyncadd [#allocation4], %s154
      %s157 = sshll.u32 [#allocation5], 4
      %s158 = int_to_ptr.vmem [resolvable:$true] %s157
      %160 = dma.vmem_to_hbm [thread:$0]  %s158, 32, %s3, [#allocation4]
    $region21: #{tpu_custom_call.1} parent=1 // pred_fallthru
      _
    // Predicated region
    $region22: #{tpu_custom_call.1} parent=1 // pred_check
      _
    $region23: #{tpu_custom_call.1} parent=1 // pred_check_branch
      %162 = sbr.rel (0) target = $region25
    $region24: #{tpu_custom_call.1} parent=1 // pred_region
      %163 = dma.done [#allocation4], 32
    $region25: #{tpu_custom_call.1} parent=1 // pred_fallthru
      _
    %164 = vsyncpa [#allocation3], 1
    %165 = vsyncpa [#allocation4], 1

</llo_original>
